<compile_context>
chip_gen: v7x
topology: tpu7x:2x2x1
jax: 0.10.0
libtpu: 0.0.40
codegen_flags: <defaults>
</compile_context>

<pallas_src>
import functools

import jax
import jax.numpy as jnp
from jax.experimental import pallas as pl
from jax.experimental.pallas import tpu as pltpu


# Total budget for the double-buffered input + output x tiles (4 live tiles).
# Keeps us comfortably inside every generation's physical VMEM (64 MiB on v7x).
_TILE_BUDGET_BYTES = 16 * 1024 * 1024
_MIN_VMEM_LIMIT_BYTES = 32 * 1024 * 1024
_MAX_VMEM_LIMIT_BYTES = 128 * 1024 * 1024


def _se_kernel(hw_true, x_ref, w1t_ref, b1_ref, w2t_ref, b2_ref, o_ref):
    # x_ref: (Nb, C, HW)   w1t: (C, R)  b1: (1, R)  w2t: (R, C)  b2: (1, C)
    x = x_ref[...]                                                # (Nb, C, HW)
    # AdaptiveAvgPool2d(1): exact mean over the true spatial extent.
    pooled = jnp.sum(x, axis=-1) * jnp.float32(1.0 / hw_true)     # (Nb, C) f32
    # Conv2d(C -> R, 1x1) over the batch tile: (Nb, C) @ (C, R) + b1
    h = jnp.dot(pooled, w1t_ref[...],
                preferred_element_type=jnp.float32) + b1_ref[...]  # (Nb, R)
    h = h * jax.nn.sigmoid(h)                                     # SiLU
    # Conv2d(R -> C, 1x1): (Nb, R) @ (R, C) + b2
    s = jnp.dot(h, w2t_ref[...],
                preferred_element_type=jnp.float32) + b2_ref[...]  # (Nb, C)
    gate = jax.nn.sigmoid(s)                                      # (Nb, C)
    # Broadcast the per-(n, c) gate over the spatial lanes.
    o_ref[...] = (x * gate[:, :, None]).astype(o_ref.dtype)       # (Nb, C, HW)


@jax.jit
def squeeze_excitation(x, w1, b1, w2, b2):
    """x: (N, C, H, W); w1: (R, C); b1: (R,); w2: (C, R); b2: (C,)."""
    N, C, H, W = x.shape
    R = w1.shape[0]
    HW = H * W

    # Batch-tile size from the VMEM budget (in + out tiles, double-buffered).
    bytes_per_sample = C * HW * 4
    nb_cap = max(1, _TILE_BUDGET_BYTES // (4 * bytes_per_sample))
    Nb = min(N, nb_cap)
    # Keep >= 2 grid steps when possible: enables DMA/compute overlap and lets
    # v7x's two TensorCores both get work on the "parallel" batch axis.
    if N >= 2 and pl.cdiv(N, Nb) < 2:
        Nb = pl.cdiv(N, 2)
    grid = (pl.cdiv(N, Nb),)

    # Free views / tiny reshapes; no activation copies.
    x_flat = x.reshape(N, C, HW)
    w1t = w1.T                    # (C, R)
    w2t = w2.T                    # (R, C)
    b1r = b1.reshape(1, R)
    b2r = b2.reshape(1, C)

    # Scoped VMEM sized to what we actually use (tiles + resident weights).
    tile_bytes = Nb * C * HW * 4
    weight_bytes = (2 * C * R + C + R) * 4
    vmem_limit = int(min(_MAX_VMEM_LIMIT_BYTES,
                         max(_MIN_VMEM_LIMIT_BYTES,
                             4 * tile_bytes + weight_bytes + (2 << 20))))
    # TODO(synk): if a single sample's (C, HW) slab ever exceeds physical VMEM
    # (not the case for realistic SE shapes), add a spatial grid axis with a
    # pooled-sum accumulator instead of growing the tile.

    kernel = functools.partial(_se_kernel, HW)

    out = pl.pallas_call(
        kernel,
        out_shape=jax.ShapeDtypeStruct((N, C, HW), x.dtype),
        grid_spec=pltpu.PrefetchScalarGridSpec(
            num_scalar_prefetch=0,
            grid=grid,
            in_specs=[
                pl.BlockSpec((Nb, C, HW), lambda n: (n, 0, 0)),
                # Constant index_maps: weights DMA'd once, stay VMEM-resident.
                pl.BlockSpec((C, R), lambda n: (0, 0)),
                pl.BlockSpec((1, R), lambda n: (0, 0)),
                pl.BlockSpec((R, C), lambda n: (0, 0)),
                pl.BlockSpec((1, C), lambda n: (0, 0)),
            ],
            out_specs=pl.BlockSpec((Nb, C, HW), lambda n: (n, 0, 0)),
        ),
        compiler_params=pltpu.CompilerParams(
            dimension_semantics=("parallel",),
            vmem_limit_bytes=vmem_limit,
        ),
        cost_estimate=pl.CostEstimate(
            flops=2 * N * C * HW + 4 * N * C * R,
            transcendentals=N * (R + C),
            bytes_accessed=2 * N * C * HW * 4,
        ),
    )(x_flat, w1t, b1r, w2t, b2r)

    return out.reshape(N, C, H, W)


def _reference(x, w1, b1, w2, b2):
    # Pure-JAX reference of the PyTorch forward (NCHW).
    pooled = jnp.mean(x, axis=(2, 3))                       # (N, C)
    h = pooled @ w1.T + b1                                  # (N, R)
    h = h * jax.nn.sigmoid(h)                               # SiLU
    s = h @ w2.T + b2                                       # (N, C)
    gate = jax.nn.sigmoid(s)[:, :, None, None]              # (N, C, 1, 1)
    return x * gate


if __name__ == "__main__":
    N, C, H, W = 2, 4, 16, 16
    R = 2  # reduced_dim

    key = jax.random.PRNGKey(0)
    kx, k1, k2, k3, k4 = jax.random.split(key, 5)

    x = jax.random.normal(kx, (N, C, H, W), dtype=jnp.float32)
    # Conv2d(C,R,1) weight -> (R,C); Conv2d(R,C,1) weight -> (C,R)
    w1 = jax.random.normal(k1, (R, C), dtype=jnp.float32) * 0.5
    b1 = jax.random.normal(k2, (R,), dtype=jnp.float32) * 0.1
    w2 = jax.random.normal(k3, (C, R), dtype=jnp.float32) * 0.5
    b2 = jax.random.normal(k4, (C,), dtype=jnp.float32) * 0.1

    out = squeeze_excitation(x, w1, b1, w2, b2)
    out = jax.block_until_ready(out)

    ref = _reference(x, w1, b1, w2, b2)
    assert out.shape == (N, C, H, W)
    assert jnp.allclose(out, ref, atol=1e-5, rtol=1e-5)

    print("KERNEL_OK")
</pallas_src>

<mosaic_0001>
module attributes {stable_mosaic.version = 11 : i64} {
  func.func @_se_kernel(%arg0: i32, %arg1: memref<1x4x256xf32, #tpu.memory_space<vmem>>, %arg2: memref<4x2xf32, #tpu.memory_space<vmem>>, %arg3: memref<1x2xf32, #tpu.memory_space<vmem>>, %arg4: memref<2x4xf32, #tpu.memory_space<vmem>>, %arg5: memref<1x4xf32, #tpu.memory_space<vmem>>, %arg6: memref<1x4x256xf32, #tpu.memory_space<vmem>>) attributes {dimension_semantics = [#tpu.dimension_semantics<parallel>], iteration_bounds = array<i64: 2>, scalar_prefetch = 0 : i64, scratch_operands = 0 : i64, tpu.core_type = #tpu.core_type<tc>, window_params = [{transform_indices = @transform_0, window_bounds = array<i64: 1, 4, 256>}, {pipeline_mode = #tpu.pipeline_mode<synchronous>, transform_indices = @transform_1, window_bounds = array<i64: 4, 2>}, {pipeline_mode = #tpu.pipeline_mode<synchronous>, transform_indices = @transform_2, window_bounds = array<i64: 1, 2>}, {pipeline_mode = #tpu.pipeline_mode<synchronous>, transform_indices = @transform_3, window_bounds = array<i64: 2, 4>}, {pipeline_mode = #tpu.pipeline_mode<synchronous>, transform_indices = @transform_4, window_bounds = array<i64: 1, 4>}, {transform_indices = @transform_5, window_bounds = array<i64: 1, 4, 256>}]} {
    %c0 = arith.constant 0 : index
    %c0_0 = arith.constant 0 : index
    %c0_1 = arith.constant 0 : index
    %0 = vector.load %arg1[%c0, %c0_0, %c0_1] : memref<1x4x256xf32, #tpu.memory_space<vmem>>, vector<1x4x256xf32>
    %cst = arith.constant dense<0.000000e+00> : vector<1x4xf32>
    %1 = vector.multi_reduction <add>, %0, %cst [2] : vector<1x4x256xf32> to vector<1x4xf32>
    %cst_2 = arith.constant 3.906250e-03 : f32
    %2 = vector.broadcast %cst_2 : f32 to vector<1x4xf32>
    %3 = arith.mulf %1, %2 : vector<1x4xf32>
    %c0_3 = arith.constant 0 : index
    %c0_4 = arith.constant 0 : index
    %4 = vector.load %arg2[%c0_3, %c0_4] : memref<4x2xf32, #tpu.memory_space<vmem>>, vector<4x2xf32>
    %cst_5 = arith.constant dense<0.000000e+00> : vector<1x2xf32>
    %5 = tpu.matmul %3, %4, %cst_5 {dimension_numbers = #tpu.dot_dimension_numbers<[1], [0], [0], [1], [0, 0, 1, 1], [], []>} : vector<1x4xf32>, vector<4x2xf32>, vector<1x2xf32> -> vector<1x2xf32>
    %c0_6 = arith.constant 0 : index
    %c0_7 = arith.constant 0 : index
    %6 = vector.load %arg3[%c0_6, %c0_7] : memref<1x2xf32, #tpu.memory_space<vmem>>, vector<1x2xf32>
    %7 = arith.addf %5, %6 : vector<1x2xf32>
    %8 = arith.negf %7 : vector<1x2xf32>
    %9 = math.exp %8 : vector<1x2xf32>
    %cst_8 = arith.constant 1.000000e+00 : f32
    %10 = vector.broadcast %cst_8 : f32 to vector<1x2xf32>
    %11 = arith.addf %10, %9 : vector<1x2xf32>
    %12 = arith.divf %10, %11 : vector<1x2xf32>
    %13 = arith.mulf %7, %12 : vector<1x2xf32>
    %c0_9 = arith.constant 0 : index
    %c0_10 = arith.constant 0 : index
    %14 = vector.load %arg4[%c0_9, %c0_10] : memref<2x4xf32, #tpu.memory_space<vmem>>, vector<2x4xf32>
    %cst_11 = arith.constant dense<0.000000e+00> : vector<1x4xf32>
    %15 = tpu.matmul %13, %14, %cst_11 {dimension_numbers = #tpu.dot_dimension_numbers<[1], [0], [0], [1], [0, 0, 1, 1], [], []>} : vector<1x2xf32>, vector<2x4xf32>, vector<1x4xf32> -> vector<1x4xf32>
    %c0_12 = arith.constant 0 : index
    %c0_13 = arith.constant 0 : index
    %16 = vector.load %arg5[%c0_12, %c0_13] : memref<1x4xf32, #tpu.memory_space<vmem>>, vector<1x4xf32>
    %17 = arith.addf %15, %16 : vector<1x4xf32>
    %18 = arith.negf %17 : vector<1x4xf32>
    %19 = math.exp %18 : vector<1x4xf32>
    %cst_14 = arith.constant 1.000000e+00 : f32
    %20 = vector.broadcast %cst_14 : f32 to vector<1x4xf32>
    %21 = arith.addf %20, %19 : vector<1x4xf32>
    %22 = arith.divf %20, %21 : vector<1x4xf32>
    %23 = vector.shape_cast %22 : vector<1x4xf32> to vector<1x4x1xf32>
    %24 = vector.broadcast %23 : vector<1x4x1xf32> to vector<1x4x256xf32>
    %25 = arith.mulf %0, %24 : vector<1x4x256xf32>
    %c0_15 = arith.constant 0 : index
    %c0_16 = arith.constant 0 : index
    %c0_17 = arith.constant 0 : index
    %26 = vector.load %arg6[%c0_15, %c0_16, %c0_17] : memref<1x4x256xf32, #tpu.memory_space<vmem>>, vector<1x4x256xf32>
    tpu.vector_store %arg6[%c0_15, %c0_16, %c0_17], %25 {strides = array<i32>} : memref<1x4x256xf32, #tpu.memory_space<vmem>>, vector<1x4x256xf32>,
    return
  }
  func.func @transform_0(%arg0: i32) -> (i32, i32, i32) {
    %c0_i32 = arith.constant 0 : i32
    %c0_i32_0 = arith.constant 0 : i32
    %c0_i32_1 = arith.constant 0 : i32
    return %arg0, %c0_i32, %c0_i32_0 : i32, i32, i32
  }
  func.func @transform_1(%arg0: i32) -> (i32, i32) {
    %c0_i32 = arith.constant 0 : i32
    %c0_i32_0 = arith.constant 0 : i32
    %c0_i32_1 = arith.constant 0 : i32
    return %c0_i32, %c0_i32_0 : i32, i32
  }
  func.func @transform_2(%arg0: i32) -> (i32, i32) {
    %c0_i32 = arith.constant 0 : i32
    %c0_i32_0 = arith.constant 0 : i32
    %c0_i32_1 = arith.constant 0 : i32
    return %c0_i32, %c0_i32_0 : i32, i32
  }
  func.func @transform_3(%arg0: i32) -> (i32, i32) {
    %c0_i32 = arith.constant 0 : i32
    %c0_i32_0 = arith.constant 0 : i32
    %c0_i32_1 = arith.constant 0 : i32
    return %c0_i32, %c0_i32_0 : i32, i32
  }
  func.func @transform_4(%arg0: i32) -> (i32, i32) {
    %c0_i32 = arith.constant 0 : i32
    %c0_i32_0 = arith.constant 0 : i32
    %c0_i32_1 = arith.constant 0 : i32
    return %c0_i32, %c0_i32_0 : i32, i32
  }
  func.func @transform_5(%arg0: i32) -> (i32, i32, i32) {
    %c0_i32 = arith.constant 0 : i32
    %c0_i32_0 = arith.constant 0 : i32
    %c0_i32_1 = arith.constant 0 : i32
    return %arg0, %c0_i32, %c0_i32_0 : i32, i32, i32
  }
}

</mosaic_0001>

<llo_original>
// kernel: squeeze_excitation.1
$region0: #{squeeze_excitation.1}
  #allocation0 [shape = 'u32[]', space=smem, size = 0x4, offset = 0x4, fixed_abs, tag = 'smem constant byte address 0x4 - core index']
  #allocation1 [shape = 'u32[144,128]{1,0:T(1,128)}', space=vmem, size = 0x12000, scoped, tag = 'internal scratch']
  %s0 = inlined_call_operand.vmem [shape: f32[2,4,256], index: 0, kind: input, shape index: {}]
  %s1 = inlined_call_operand.vmem [shape: f32[4,2], index: 1, kind: input, shape index: {}]
  %s2 = inlined_call_operand.vmem [shape: f32[1,2], index: 2, kind: input, shape index: {}]
  %s3 = inlined_call_operand.vmem [shape: f32[2,4], index: 3, kind: input, shape index: {}]
  %s4 = inlined_call_operand.vmem [shape: f32[1,4], index: 4, kind: input, shape index: {}]
  %s5 = inlined_call_operand.vmem [shape: f32[2,4,256], index: 5, kind: output, shape index: {}]
  %s6 = sld [smem:[#allocation0]]
  $region53: #{squeeze_excitation.1} parent=0
    _
  %s8 = ssub.s32 1, %s6
  %s9 = scalar_select 0, %s8, %s6
  loop: start=0, step=1, limit=4
  $region2: #{squeeze_excitation.1} parent=0 // loop_pre_header
    _
  $region3: #{squeeze_excitation.1} parent=0 // loop_header
    %s11 = sphi 0, %s15
    %p12 = scmp.ge.s32.totalorder %s11, 4
    %s21 = sphi 0, %s23
    %s24 = sphi 0, %s21
    %s25 = sphi 0, %s24
    %s41 = sphi 0, %s25
    %s45 = sphi 0, %s45
    %s47 = sphi 0, %s45
    %s48 = sphi 0, %s47
    %s62 = sphi 0, %s48
    %s66 = sphi 0, %s66
    %s68 = sphi 0, %s66
    %s69 = sphi 0, %s68
    %s83 = sphi 0, %s69
    %s87 = sphi 0, %s87
    %s89 = sphi 0, %s87
    %s90 = sphi 0, %s89
    %s104 = sphi 0, %s90
    %s108 = sphi 0, %s108
    %s110 = sphi 0, %s108
    %s111 = sphi 0, %s110
    %s125 = sphi 0, %s111
    %s131 = sphi 0, %s133
    %s134 = sphi 0, %s131
    %s135 = sphi 0, %s134
    %s151 = sphi 0, %s135
  $region4: #{squeeze_excitation.1} parent=0 // loop_header_branch
    %14 = sbr.rel (%p12) target = $region8
  $region5: #{squeeze_excitation.1} parent=0 // loop_body
    %s16 = ssub.s32 %s11, 1
    %s17 = ssub.s32 %s11, 2
    %s18 = sadd.s32 %s11, 1
    %s19 = ssub.s32 %s11, %s18
    %p20 = scmp.eq.s32.totalorder %s19, 0
    %s22 = sadd.s32 %s21, 1
    %s23 = scalar_select %p20, %s21, %s22
    %p26 = pneg %p20
    %p27 = scmp.eq.s32.totalorder %s11, 1
    %p28 = por %p26, %p27
    %p29 = scmp.ne.s32.totalorder %s21, %s24
    %p30 = scmp.eq.s32.totalorder %s11, 0
    %p31 = por %p29, %p30
    %p32 = scmp.ne.s32.totalorder %s21, %s24
    %p33 = scmp.eq.s32.totalorder %s16, 1
    %p34 = por %p32, %p33
    %p35 = scmp.ne.s32.totalorder %s24, %s25
    %p36 = scmp.eq.s32.totalorder %s16, 0
    %p37 = por %p35, %p36
    %p38 = scmp.ne.s32.totalorder %s24, %s25
    %p39 = scmp.eq.s32.totalorder %s17, 1
    %p40 = por %p38, %p39
    %p42 = scmp.ne.s32.totalorder %s25, %s41
    %p43 = scmp.eq.s32.totalorder %s17, 0
    %p44 = por %p42, %p43
    %s46 = sadd.s32 %s45, 1
    %p49 = scmp.eq.s32.totalorder %s11, 1
    %p50 = scmp.ne.s32.totalorder %s45, %s47
    %p51 = scmp.eq.s32.totalorder %s11, 0
    %p52 = por %p50, %p51
    %p53 = scmp.ne.s32.totalorder %s45, %s47
    %p54 = scmp.eq.s32.totalorder %s16, 1
    %p55 = por %p53, %p54
    %p56 = scmp.ne.s32.totalorder %s47, %s48
    %p57 = scmp.eq.s32.totalorder %s16, 0
    %p58 = por %p56, %p57
    %p59 = scmp.ne.s32.totalorder %s47, %s48
    %p60 = scmp.eq.s32.totalorder %s17, 1
    %p61 = por %p59, %p60
    %p63 = scmp.ne.s32.totalorder %s48, %s62
    %p64 = scmp.eq.s32.totalorder %s17, 0
    %p65 = por %p63, %p64
    %s67 = sadd.s32 %s66, 1
    %p70 = scmp.eq.s32.totalorder %s11, 1
    %p71 = scmp.ne.s32.totalorder %s66, %s68
    %p72 = scmp.eq.s32.totalorder %s11, 0
    %p73 = por %p71, %p72
    %p74 = scmp.ne.s32.totalorder %s66, %s68
    %p75 = scmp.eq.s32.totalorder %s16, 1
    %p76 = por %p74, %p75
    %p77 = scmp.ne.s32.totalorder %s68, %s69
    %p78 = scmp.eq.s32.totalorder %s16, 0
    %p79 = por %p77, %p78
    %p80 = scmp.ne.s32.totalorder %s68, %s69
    %p81 = scmp.eq.s32.totalorder %s17, 1
    %p82 = por %p80, %p81
    %p84 = scmp.ne.s32.totalorder %s69, %s83
    %p85 = scmp.eq.s32.totalorder %s17, 0
    %p86 = por %p84, %p85
    %s88 = sadd.s32 %s87, 1
    %p91 = scmp.eq.s32.totalorder %s11, 1
    %p92 = scmp.ne.s32.totalorder %s87, %s89
    %p93 = scmp.eq.s32.totalorder %s11, 0
    %p94 = por %p92, %p93
    %p95 = scmp.ne.s32.totalorder %s87, %s89
    %p96 = scmp.eq.s32.totalorder %s16, 1
    %p97 = por %p95, %p96
    %p98 = scmp.ne.s32.totalorder %s89, %s90
    %p99 = scmp.eq.s32.totalorder %s16, 0
    %p100 = por %p98, %p99
    %p101 = scmp.ne.s32.totalorder %s89, %s90
    %p102 = scmp.eq.s32.totalorder %s17, 1
    %p103 = por %p101, %p102
    %p105 = scmp.ne.s32.totalorder %s90, %s104
    %p106 = scmp.eq.s32.totalorder %s17, 0
    %p107 = por %p105, %p106
    %s109 = sadd.s32 %s108, 1
    %p112 = scmp.eq.s32.totalorder %s11, 1
    %p113 = scmp.ne.s32.totalorder %s108, %s110
    %p114 = scmp.eq.s32.totalorder %s11, 0
    %p115 = por %p113, %p114
    %p116 = scmp.ne.s32.totalorder %s108, %s110
    %p117 = scmp.eq.s32.totalorder %s16, 1
    %p118 = por %p116, %p117
    %p119 = scmp.ne.s32.totalorder %s110, %s111
    %p120 = scmp.eq.s32.totalorder %s16, 0
    %p121 = por %p119, %p120
    %p122 = scmp.ne.s32.totalorder %s110, %s111
    %p123 = scmp.eq.s32.totalorder %s17, 1
    %p124 = por %p122, %p123
    %p126 = scmp.ne.s32.totalorder %s111, %s125
    %p127 = scmp.eq.s32.totalorder %s17, 0
    %p128 = por %p126, %p127
    %s129 = ssub.s32 %s11, %s18
    %p130 = scmp.eq.s32.totalorder %s129, 0
    %s132 = sadd.s32 %s131, 1
    %s133 = scalar_select %p130, %s131, %s132
    %p136 = pneg %p130
    %p137 = scmp.eq.s32.totalorder %s11, 1
    %p138 = por %p136, %p137
    %p139 = scmp.ne.s32.totalorder %s131, %s134
    %p140 = scmp.eq.s32.totalorder %s11, 0
    %p141 = por %p139, %p140
    %p142 = scmp.ne.s32.totalorder %s131, %s134
    %p143 = scmp.eq.s32.totalorder %s16, 1
    %p144 = por %p142, %p143
    %p145 = scmp.ne.s32.totalorder %s134, %s135
    %p146 = scmp.eq.s32.totalorder %s16, 0
    %p147 = por %p145, %p146
    %p148 = scmp.ne.s32.totalorder %s134, %s135
    %p149 = scmp.eq.s32.totalorder %s17, 1
    %p150 = por %p148, %p149
    %p152 = scmp.ne.s32.totalorder %s135, %s151
    %p153 = scmp.eq.s32.totalorder %s17, 0
    %p154 = por %p152, %p153
    %p155 = scmp.le.s32.totalorder 1, %s11
    %p156 = scmp.lt.s32.totalorder %s11, 3
    %p157 = pnand %p155, %p156
    %p158 = pneg %p157
    // Predicated region
    $region9: #{squeeze_excitation.1} parent=5 // pred_check
      _
    $region10: #{squeeze_excitation.1} parent=5 // pred_check_branch
      %160 = sbr.rel (%p157) target = $region12
    $region11: #{squeeze_excitation.1} parent=5 // pred_region
      %s161 = ssub.s32 %s11, 1
      // Predicated region
      $region13: #{squeeze_excitation.1} parent=11 // pred_check
        %p162 = pneg %p58
      $region14: #{squeeze_excitation.1} parent=11 // pred_check_branch
        %164 = sbr.rel (%p162) target = $region16
      $region15: #{squeeze_excitation.1} parent=11 // pred_region
        _
      $region16: #{squeeze_excitation.1} parent=11 // pred_fallthru
        _
      // Predicated region
      $region17: #{squeeze_excitation.1} parent=11 // pred_check
        %p165 = pneg %p79
      $region18: #{squeeze_excitation.1} parent=11 // pred_check_branch
        %167 = sbr.rel (%p165) target = $region20
      $region19: #{squeeze_excitation.1} parent=11 // pred_region
        _
      $region20: #{squeeze_excitation.1} parent=11 // pred_fallthru
        _
      // Predicated region
      $region21: #{squeeze_excitation.1} parent=11 // pred_check
        %p168 = pneg %p100
      $region22: #{squeeze_excitation.1} parent=11 // pred_check_branch
        %170 = sbr.rel (%p168) target = $region24
      $region23: #{squeeze_excitation.1} parent=11 // pred_region
        _
      $region24: #{squeeze_excitation.1} parent=11 // pred_fallthru
        _
      // Predicated region
      $region25: #{squeeze_excitation.1} parent=11 // pred_check
        %p171 = pneg %p121
      $region26: #{squeeze_excitation.1} parent=11 // pred_check_branch
        %173 = sbr.rel (%p171) target = $region28
      $region27: #{squeeze_excitation.1} parent=11 // pred_region
        _
      $region28: #{squeeze_excitation.1} parent=11 // pred_fallthru
        _
    $region12: #{squeeze_excitation.1} parent=5 // pred_fallthru
      _
    %p174 = scmp.lt.s32.totalorder %s11, 2
    // Predicated region
    $region29: #{squeeze_excitation.1} parent=5 // pred_check
      %p175 = pneg %p174
    $region30: #{squeeze_excitation.1} parent=5 // pred_check_branch
      %177 = sbr.rel (%p175) target = $region32
    $region31: #{squeeze_excitation.1} parent=5 // pred_region
      // Predicated region
      $region33: #{squeeze_excitation.1} parent=31 // pred_check
        %p178 = pneg %p31
      $region34: #{squeeze_excitation.1} parent=31 // pred_check_branch
        %180 = sbr.rel (%p178) target = $region36
      $region35: #{squeeze_excitation.1} parent=31 // pred_region
        %p181 = scmp.lt.s32.totalorder %s11, 1
        %s182 = scalar_select %p181, %s11, 1
        %s183 = smul.addr %s182, 2
        %s184 = smul.addr %s183, 4
        %s185 = scalar_lea.vmem %s0, %s184
      $region36: #{squeeze_excitation.1} parent=31 // pred_fallthru
        _
    $region32: #{squeeze_excitation.1} parent=5 // pred_fallthru
      _
    %p186 = scmp.le.s32.totalorder 1, %s11
    %p187 = scmp.lt.s32.totalorder %s11, 3
    %p188 = pnand %p186, %p187
    %p189 = pneg %p188
    // Predicated region
    $region37: #{squeeze_excitation.1} parent=5 // pred_check
      _
    $region38: #{squeeze_excitation.1} parent=5 // pred_check_branch
      %191 = sbr.rel (%p188) target = $region40
    $region39: #{squeeze_excitation.1} parent=5 // pred_region
      %s192 = ssub.s32 %s11, 1
      %p193 = scmp.lt.s32.totalorder %s16, 1
      %s194 = scalar_select %p193, %s16, 1
      %s195 = smul.addr %s194, 2
      %s196 = smul.addr %s195, 4
      %s197 = scalar_lea.vmem %s0, %s196
      %p198 = pneg %p37
      %p199 = pneg %p34
      %p200 = pneg %p58
      %p201 = pneg %p55
      %p202 = pneg %p79
      %p203 = pneg %p76
      %p204 = pneg %p100
      %p205 = pneg %p97
      %p206 = pneg %p121
      %p207 = pneg %p118
      %p208 = pneg %p147
      %p209 = pneg %p144
      %p210 = scmp.lt.s32.totalorder %s16, 1
      %s211 = scalar_select %p210, %s16, 1
      %s212 = smul.addr %s211, 2
      %s213 = smul.addr %s212, 4
      %s214 = scalar_lea.vmem %s5, %s213
      %p215 = scmp.lt.s32.totalorder %s16, 1
      %s216 = scalar_select %p215, %s16, 1
      %s217 = smul.addr %s216, 2
      %s218 = smul.addr %s217, 4
      %s219 = scalar_lea.vmem %s0, %s218
      %p220 = scmp.lt.s32.totalorder %s16, 1
      %s221 = scalar_select %p220, %s16, 1
      %s222 = smul.addr %s221, 2
      %s223 = smul.addr %s222, 4
      %s224 = scalar_lea.vmem %s5, %s223
      %v225 = vld [vmem:[%s219] sm:$0xff]
      %v227 = vcombine.high %v225, %v225
      %vm229 = vcmask 1043456
      %v230 = vsel %vm229, %v225, 0.0
      %v231 = vsel %vm229, %v227, 0.0
      %v232 = vadd.f32 %v230, %v231
      %233 = vadd.xlane.f32.xlu0 %v232
      %v234 = vpop.xlane.xlu0 %233
      %v235 = vmul.f32 %v234, 0.00390625
      %v236 = vld [vmem:[%s1] sm:$0xf]
      %v237 = vld [vmem:[%s2] sm:$0x1]
      %v239 = vlaneseq
      %v240 = vand.u32 %v239, 127
      %v241 = vlaneseq
      %v242 = vshrl.u32 %v241, 7
      %v243 = vsub.s32 %v240, %v242
      %v244 = vrot.slane %v235, %v243
      %vm245 = vcmask 31744
      %v246 = vsel %vm245, %v244, 0
      %v249 = vsel %vm229, %v236, 0
      %251 = vmatprep.subr.mxu0 0.0
      %252 = vmatpush1.msra.mxu0 %v249
      %253 = vmatprep.subr.mxu0 0.0
      %254 = vmatpush1.msra.mxu0 0.0
      %255 = vmatprep.subr.mxu0 0.0
      %256 = vmatpush1.msra.mxu0 0.0
      %257 = vmatprep.subr.mxu0 0.0
      %258 = vmatpush1.msra.mxu0 0.0
      %259 = vmatprep.subr.mxu0 0.0
      %260 = vmatpush1.msra.mxu0 0.0
      %261 = vmatprep.subr.mxu0 0.0
      %262 = vmatpush1.msra.mxu0 0.0
      %263 = vmatprep.subr.mxu0 0.0
      %264 = vmatpush1.msra.mxu0 0.0
      %265 = vmatprep.subr.mxu0 0.0
      %266 = vmatpush1.msra.mxu0 0.0
      %267 = vmatprep.subr.mxu0 0.0
      %268 = vmatpush1.msra.mxu0 0.0
      %269 = vmatprep.subr.mxu0 0.0
      %270 = vmatpush1.msra.mxu0 0.0
      %271 = vmatprep.subr.mxu0 0.0
      %272 = vmatpush1.msra.mxu0 0.0
      %273 = vmatprep.subr.mxu0 0.0
      %274 = vmatpush1.msra.mxu0 0.0
      %275 = vmatprep.subr.mxu0 0.0
      %276 = vmatpush1.msra.mxu0 0.0
      %277 = vmatprep.subr.mxu0 0.0
      %278 = vmatpush1.msra.mxu0 0.0
      %279 = vmatprep.subr.mxu0 0.0
      %280 = vmatpush1.msra.mxu0 0.0
      %281 = vmatprep.subr.mxu0 0.0
      %282 = vmatpush1.msra.mxu0 0.0
      %283 = vmatprep.subr.mxu0 0.0
      %284 = vmatpush1.msra.mxu0 0.0
      %285 = vmatprep.subr.mxu0 0.0
      %286 = vmatpush1.msra.mxu0 0.0
      %287 = vmatprep.subr.mxu0 0.0
      %288 = vmatpush1.msra.mxu0 0.0
      %289 = vmatprep.subr.mxu0 0.0
      %290 = vmatpush1.msra.mxu0 0.0
      %291 = vmatprep.subr.mxu0 0.0
      %292 = vmatpush1.msra.mxu0 0.0
      %293 = vmatprep.subr.mxu0 0.0
      %294 = vmatpush1.msra.mxu0 0.0
      %295 = vmatprep.subr.mxu0 0.0
      %296 = vmatpush1.msra.mxu0 0.0
      %297 = vmatprep.subr.mxu0 0.0
      %298 = vmatpush1.msra.mxu0 0.0
      %299 = vmatprep.subr.mxu0 0.0
      %300 = vmatpush1.msra.mxu0 0.0
      %301 = vmatprep.subr.mxu0 0.0
      %302 = vmatpush1.msra.mxu0 0.0
      %303 = vmatprep.subr.mxu0 0.0
      %304 = vmatpush1.msra.mxu0 0.0
      %305 = vmatprep.subr.mxu0 0.0
      %306 = vmatpush1.msra.mxu0 0.0
      %307 = vmatprep.subr.mxu0 0.0
      %308 = vmatpush1.msra.mxu0 0.0
      %309 = vmatprep.subr.mxu0 0.0
      %310 = vmatpush1.msra.mxu0 0.0
      %311 = vmatprep.subr.mxu0 0.0
      %312 = vmatpush1.msra.mxu0 0.0
      %313 = vmatprep.subr.mxu0 0.0
      %314 = vmatpush1.msra.mxu0 0.0
      %315 = vmatprep.mubr.f32.mxu0 0.0
      %316 = vmatmul.mubr.f32.gmra.mrb[0].mxu0 %v246
      %v317 = vpop.f32.mrb[0].mxu0
      %v318 = vadd.f32 %v237, %v317
      %v319 = vpop.f32.mrb[0].mxu0
      %320 = vdwg.mxu0
      %v321 = vxor.u32 %v318, 2147483648
      %v322 = vmul.f32 %v321, 1.442695
      %v323 = vpow.pop %v322
      %v324 = vadd.f32 %v323, 1.0
      %v325 = vrcp.pop %v324
      %v326 = vmul.f32 1.0, %v325
      %v327 = vmul.f32 %v318, %v326
      %v328 = vld [vmem:[%s3] sm:$0x3]
      %v329 = vld [vmem:[%s4] sm:$0x1]
      %vm330 = vcmask 15360
      %v332 = vsel %vm330, %v327, 0
      %vm334 = vcmask 1041408
      %v336 = vsel %vm334, %v328, 0
      %338 = vmatprep.subr.mxu0 0.0
      %339 = vmatpush1.msra.mxu0 %v336
      %340 = vmatprep.subr.mxu0 0.0
      %341 = vmatpush1.msra.mxu0 0.0
      %342 = vmatprep.subr.mxu0 0.0
      %343 = vmatpush1.msra.mxu0 0.0
      %344 = vmatprep.subr.mxu0 0.0
      %345 = vmatpush1.msra.mxu0 0.0
      %346 = vmatprep.subr.mxu0 0.0
      %347 = vmatpush1.msra.mxu0 0.0
      %348 = vmatprep.subr.mxu0 0.0
      %349 = vmatpush1.msra.mxu0 0.0
      %350 = vmatprep.subr.mxu0 0.0
      %351 = vmatpush1.msra.mxu0 0.0
      %352 = vmatprep.subr.mxu0 0.0
      %353 = vmatpush1.msra.mxu0 0.0
      %354 = vmatprep.subr.mxu0 0.0
      %355 = vmatpush1.msra.mxu0 0.0
      %356 = vmatprep.subr.mxu0 0.0
      %357 = vmatpush1.msra.mxu0 0.0
      %358 = vmatprep.subr.mxu0 0.0
      %359 = vmatpush1.msra.mxu0 0.0
      %360 = vmatprep.subr.mxu0 0.0
      %361 = vmatpush1.msra.mxu0 0.0
      %362 = vmatprep.subr.mxu0 0.0
      %363 = vmatpush1.msra.mxu0 0.0
      %364 = vmatprep.subr.mxu0 0.0
      %365 = vmatpush1.msra.mxu0 0.0
      %366 = vmatprep.subr.mxu0 0.0
      %367 = vmatpush1.msra.mxu0 0.0
      %368 = vmatprep.subr.mxu0 0.0
      %369 = vmatpush1.msra.mxu0 0.0
      %370 = vmatprep.subr.mxu0 0.0
      %371 = vmatpush1.msra.mxu0 0.0
      %372 = vmatprep.subr.mxu0 0.0
      %373 = vmatpush1.msra.mxu0 0.0
      %374 = vmatprep.subr.mxu0 0.0
      %375 = vmatpush1.msra.mxu0 0.0
      %376 = vmatprep.subr.mxu0 0.0
      %377 = vmatpush1.msra.mxu0 0.0
      %378 = vmatprep.subr.mxu0 0.0
      %379 = vmatpush1.msra.mxu0 0.0
      %380 = vmatprep.subr.mxu0 0.0
      %381 = vmatpush1.msra.mxu0 0.0
      %382 = vmatprep.subr.mxu0 0.0
      %383 = vmatpush1.msra.mxu0 0.0
      %384 = vmatprep.subr.mxu0 0.0
      %385 = vmatpush1.msra.mxu0 0.0
      %386 = vmatprep.subr.mxu0 0.0
      %387 = vmatpush1.msra.mxu0 0.0
      %388 = vmatprep.subr.mxu0 0.0
      %389 = vmatpush1.msra.mxu0 0.0
      %390 = vmatprep.subr.mxu0 0.0
      %391 = vmatpush1.msra.mxu0 0.0
      %392 = vmatprep.subr.mxu0 0.0
      %393 = vmatpush1.msra.mxu0 0.0
      %394 = vmatprep.subr.mxu0 0.0
      %395 = vmatpush1.msra.mxu0 0.0
      %396 = vmatprep.subr.mxu0 0.0
      %397 = vmatpush1.msra.mxu0 0.0
      %398 = vmatprep.subr.mxu0 0.0
      %399 = vmatpush1.msra.mxu0 0.0
      %400 = vmatprep.subr.mxu0 0.0
      %401 = vmatpush1.msra.mxu0 0.0
      %402 = vmatprep.mubr.f32.mxu0 0.0
      %403 = vmatmul.mubr.f32.gmra.mrb[0].mxu0 %v332
      %v404 = vpop.f32.mrb[0].mxu0
      %v405 = vadd.f32 %v329, %v404
      %v406 = vpop.f32.mrb[0].mxu0
      %407 = vdwg.mxu0
      %v408 = vxor.u32 %v405, 2147483648
      %v409 = vmul.f32 %v408, 1.442695
      %v410 = vpow.pop %v409
      %v411 = vadd.f32 %v410, 1.0
      %v412 = vrcp.pop %v411
      %v413 = vmul.f32 1.0, %v412
      %v414 = vlaneseq
      %v415 = vshrl.u32 %v414, 7
      %v416 = vsub.s32 0, %v415
      %v417 = vrot.slane %v413, %v416
      %419 = vbcast.lane.b32.xlu0 %v417, 256
      %v420 = vpop.permute.xlu0 %419
      %v423 = vunpack.c.l.s4 839922192
      %v424 = vunpack.c.0.s8 %v423
      %v425 = vlaneseq
      %v426 = vshrl.u32 %v425, 7
      %v427 = vsub.s32 %v424, %v426
      %v428 = vrot.slane %v420, %v427
      %v430 = vmul.f32 %v225, %v428
      %431 = vst [vmem:[%s224] sm:$0xff] %v430
      %p432 = scmp.lt.s32.totalorder %s16, 1
      %s433 = scalar_select %p432, %s16, 1
      %s434 = smul.addr %s433, 2
      %s435 = smul.addr %s434, 4
      %s436 = scalar_lea.vmem %s5, %s435
      // Predicated region
      $region41: #{squeeze_excitation.1} parent=39 // pred_check
        %p437 = pneg %p144
      $region42: #{squeeze_excitation.1} parent=39 // pred_check_branch
        %439 = sbr.rel (%p437) target = $region44
      $region43: #{squeeze_excitation.1} parent=39 // pred_region
        _
      $region44: #{squeeze_excitation.1} parent=39 // pred_fallthru
        _
    $region40: #{squeeze_excitation.1} parent=5 // pred_fallthru
      _
    %p440 = scmp.le.s32.totalorder 2, %s11
    // Predicated region
    $region45: #{squeeze_excitation.1} parent=5 // pred_check
      %p441 = pneg %p440
    $region46: #{squeeze_excitation.1} parent=5 // pred_check_branch
      %443 = sbr.rel (%p441) target = $region48
    $region47: #{squeeze_excitation.1} parent=5 // pred_region
      %s444 = ssub.s32 %s11, 2
      // Predicated region
      $region49: #{squeeze_excitation.1} parent=47 // pred_check
        %p445 = pneg %p150
      $region50: #{squeeze_excitation.1} parent=47 // pred_check_branch
        %447 = sbr.rel (%p445) target = $region52
      $region51: #{squeeze_excitation.1} parent=47 // pred_region
        %p448 = scmp.lt.s32.totalorder %s17, 1
        %s449 = scalar_select %p448, %s17, 1
        %s450 = smul.addr %s449, 2
        %s451 = smul.addr %s450, 4
        %s452 = scalar_lea.vmem %s5, %s451
      $region52: #{squeeze_excitation.1} parent=47 // pred_fallthru
        _
    $region48: #{squeeze_excitation.1} parent=5 // pred_fallthru
      _
  $region6: #{squeeze_excitation.1} parent=0 // loop_footer
    %s15 = sadd.s32 1, %s11
  $region7: #{squeeze_excitation.1} parent=0 // loop_footer_branch
    %10 = sbr.rel target = $region3
  $region8: #{squeeze_excitation.1} parent=0 // loop_exit
    _

</llo_original>
